<compile_context>
chip_gen: v5e
topology: v5e:2x2
jax: 0.10.0
libtpu: 0.0.40
codegen_flags: <defaults>
</compile_context>

<pallas_src>
import functools

import jax
import jax.numpy as jnp
from jax.experimental import pallas as pl
from jax.experimental.pallas import tpu as pltpu


_TARGET_STEP_BYTES = 2 << 20      # aim for >= ~2 MiB of x moved per grid step


# ----------------------------------------------------------------------------
# Kernels
# ----------------------------------------------------------------------------
def _reduce_kernel(shift_ref, x_ref, out_ref, acc_ref,
                   *, hw, lane_tile, n_lt, mask_tail):
    """Per-channel shifted sum / sum-of-squares over an (Nb, C, lane_tile) tile.

    shift_ref : (1, C, 1) f32   per-channel shift (running mean or 0)
    x_ref     : (Nb, C, lane_tile) native dtype
    out_ref   : (1, 2, C, 1) f32 combined [sum, sumsq] output (written once)
    acc_ref   : (2, C, 1) f32 VMEM scratch accumulator
    """
    l = pl.program_id(1)

    @pl.when(l == 0)
    def _():
        acc_ref[...] = jnp.zeros_like(acc_ref)

    def accumulate(masked):
        x = x_ref[...].astype(jnp.float32) - shift_ref[0]      # (Nb, C, LT)
        if masked:
            lane = jax.lax.broadcasted_iota(jnp.int32, x.shape, dimension=2)
            x = jnp.where(lane + l * lane_tile < hw, x, 0.0)
        s = jnp.sum(x, axis=0)                                  # (C, LT)  VALU
        q = jnp.sum(x * x, axis=0)                              # (C, LT)  VALU
        acc_ref[0] += jnp.sum(s, axis=-1, keepdims=True)        # (C, 1)   XLU
        acc_ref[1] += jnp.sum(q, axis=-1, keepdims=True)

    if mask_tail:
        # mask only the last lane tile; every other tile is unmasked VALU work
        @pl.when(l == n_lt - 1)
        def _():
            accumulate(True)

        @pl.when(l != n_lt - 1)
        def _():
            accumulate(False)
    else:
        accumulate(False)

    @pl.when(l == n_lt - 1)
    def _():
        out_ref[0] = acc_ref[...]


def _affine_kernel(x_ref, a_ref, b_ref, y_ref):
    """y = a * x + b on a lane-dense (Nb, lane_tile) tile; one FMA / element."""
    x = x_ref[...].astype(jnp.float32)                  # (Nb, LT)
    y = x * a_ref[...] + b_ref[...]                     # a/b are (1, LT) f32
    y_ref[...] = y.astype(y_ref.dtype)


# ----------------------------------------------------------------------------
# Block-size / VMEM policy
# ----------------------------------------------------------------------------
def _vmem_config():
    """(vmem_limit_bytes, pipeline_budget_bytes), generation aware."""
    try:
        info = pltpu.get_tpu_info()
        phys = int(getattr(info, "vmem_capacity_bytes", 64 << 20))
    except Exception:
        phys = 64 << 20                       # safe for every generation
    vmem_limit = min(phys // 2, 48 << 20)     # 48 MiB on v5e/v6e, 32 MiB on v7x
    pipe_budget = vmem_limit // 2             # headroom for temporaries
    return vmem_limit, pipe_budget


def _largest_divisor_leq(n, cap):
    cap = max(1, min(n, int(cap)))
    for d in range(cap, 0, -1):
        if n % d == 0:
            return d
    return 1


def _choose_pass1_blocks(n, c, hw, itemsize, target_bytes, pipe_budget):
    """(Nb, lane_tile) for the reduction pass. Nb divides N exactly."""
    row_bytes = c * hw * itemsize
    if row_bytes >= target_bytes:
        nb = 1
        lanes_want = max(128, target_bytes // (c * itemsize))
        lt = (lanes_want // 128) * 128
        if lt >= hw or hw <= 256:
            lt = hw
    else:
        lt = hw
        nb = _largest_divisor_leq(n, target_bytes // max(row_bytes, 1))

    def pipe(nb_, lt_):        # 2x double-buffered native x + f32 temporaries
        return nb_ * c * lt_ * (2 * itemsize + 4)

    while nb > 1 and pipe(nb, lt) > pipe_budget:
        nb = _largest_divisor_leq(n, nb - 1)
    while lt > 128 and lt != hw and pipe(nb, lt) > pipe_budget:
        lt = max(128, lt - 128)
    return nb, lt


def _choose_pass2_blocks(n, chw, itemsize, target_bytes, pipe_budget):
    """(Nb, lane_tile) for the affine pass on the (N, C*HW) view.
    Nb is a multiple of 8 (or the full batch) so blocks stay (8,128)-legal."""
    nb_unit = 8 if n % 8 == 0 else n
    if chw <= 512:
        lt = chw
    else:
        lanes_want = max(128, target_bytes // (nb_unit * itemsize))
        lt = min((lanes_want // 128) * 128, chw)
        lt = max(lt, 128)
        if lt >= chw:
            lt = chw
    nb = nb_unit
    while nb + nb_unit <= n and nb * lt * itemsize < target_bytes:
        nb += nb_unit

    def pipe(nb_, lt_):        # x + y double-buffered + f32 temp + a/b tiles
        return nb_ * lt_ * (4 * itemsize + 4) + 4 * lt_ * 4

    while nb > nb_unit and pipe(nb, lt) > pipe_budget:
        nb -= nb_unit
    while lt > 128 and lt != chw and pipe(nb, lt) > pipe_budget:
        lt = max(128, lt - 128)
    return nb, lt


# ----------------------------------------------------------------------------
# State init / forward
# ----------------------------------------------------------------------------
def init_batch_renorm2d_state(num_features, eps=1e-5, momentum=0.01,
                              r_d_max_inc_step=0.001):
    """Deterministic parameter/state init matching the PyTorch __init__."""
    return {
        "num_features": num_features,
        "eps": eps,
        "momentum": momentum,
        "gamma": jnp.ones((1, num_features, 1, 1), jnp.float32),
        "beta": jnp.zeros((1, num_features, 1, 1), jnp.float32),
        "running_avg_mean": jnp.zeros((1, num_features, 1, 1), jnp.float32),
        "running_avg_std": jnp.ones((1, num_features, 1, 1), jnp.float32),
        "initialized": False,        # == (init_flag is not None)
        "max_r_max": 100.0,
        "max_d_max": 100.0,
        "r_max_inc_step": r_d_max_inc_step,
        "d_max_inc_step": r_d_max_inc_step,
        "r_max": 1.0,
        "d_max": 0.0,
    }


def batch_renorm2d_forward(x, state, training=True,
                           pass1_blocks=None, pass2_blocks=None):
    """Forward pass.  Returns (y, new_state).  x is NCHW (any float dtype)."""
    N, C, H, W = x.shape
    HW = H * W
    CHW = C * HW
    itemsize = jnp.dtype(x.dtype).itemsize
    vmem_limit, pipe_budget = _vmem_config()

    eps = state["eps"]
    gamma = state["gamma"].reshape(C).astype(jnp.float32)
    beta = state["beta"].reshape(C).astype(jnp.float32)
    rmean = state["running_avg_mean"].reshape(C).astype(jnp.float32)
    rstd = state["running_avg_std"].reshape(C).astype(jnp.float32)

    # ---- pass 1: per-channel batch stats (skipped in initialized eval) ----
    need_batch_stats = training or (not state["initialized"])
    bmean = bstd = None
    if need_batch_stats:
        x3 = x.reshape(N, C, HW)                         # free view
        nb1, lt1 = pass1_blocks or _choose_pass1_blocks(
            N, C, HW, itemsize, _TARGET_STEP_BYTES, pipe_budget)
        assert N % nb1 == 0, "pass-1 image block must divide N"
        assert lt1 == HW or lt1 % 128 == 0, "lane tile must be 128-aligned"
        n_g1 = N // nb1
        n_lt1 = pl.cdiv(HW, lt1)
        mask_tail = (HW % lt1) != 0

        # Accumulate around the running mean when available: avoids the
        # E[x^2]-E[x]^2 cancellation for channels with non-zero means.
        m0 = rmean if state["initialized"] else jnp.zeros((C,), jnp.float32)
        shift3 = m0.reshape(1, C, 1)

        cost1 = pl.CostEstimate(
            flops=4 * N * C * HW, transcendentals=0,
            bytes_accessed=N * C * HW * itemsize + n_g1 * 2 * C * 4 + C * 4)

        partials = pl.pallas_call(
            functools.partial(_reduce_kernel, hw=HW, lane_tile=lt1,
                              n_lt=n_lt1, mask_tail=mask_tail),
            out_shape=jax.ShapeDtypeStruct((n_g1, 2, C, 1), jnp.float32),
            grid=(n_g1, n_lt1),
            in_specs=[pl.BlockSpec((1, C, 1), lambda g, l: (0, 0, 0)),
                      pl.BlockSpec((nb1, C, lt1), lambda g, l: (g, 0, l))],
            out_specs=pl.BlockSpec((1, 2, C, 1), lambda g, l: (g, 0, 0, 0)),
            scratch_shapes=[pltpu.VMEM((2, C, 1), jnp.float32)],
            compiler_params=pltpu.CompilerParams(
                dimension_semantics=("parallel", "arbitrary"),
                vmem_limit_bytes=vmem_limit),
            cost_estimate=cost1,
        )(shift3, x3)

        count = float(N * HW)
        ssum = jnp.sum(partials[:, 0, :, 0], axis=0)     # (C,) tiny combines
        ssq = jnp.sum(partials[:, 1, :, 0], axis=0)
        bmean = m0 + ssum / count
        # unbiased (ddof=1) variance, matching torch.std default
        var = jnp.maximum(ssq - ssum * ssum / count, 0.0) / max(count - 1.0, 1.0)
        bstd = jnp.clip(jnp.sqrt(var), eps, 1e10)

    # ---- per-channel folding (all on (C,) vectors, negligible cost) ----
    if not state["initialized"]:
        run_mean, run_std = bmean, bstd                  # init_flag branch
    else:
        run_mean, run_std = rmean, rstd

    if training:
        r = jnp.clip(bstd / run_std, 1.0 / state["r_max"], state["r_max"])
        d = jnp.clip((bmean - run_mean) / run_std, -state["d_max"], state["d_max"])
        scale = gamma * r / bstd
        shift = beta + gamma * (d - bmean * r / bstd)
    else:
        inv = 1.0 / run_std
        scale = gamma * inv
        shift = beta - gamma * run_mean * inv

    # ---- pass 2: y = a*x + b on the lane-dense (N, C*HW) view ----
    x2 = x.reshape(N, CHW)                               # free view
    a2 = jnp.repeat(scale, HW).reshape(1, CHW)           # tiny pre-expansion
    b2 = jnp.repeat(shift, HW).reshape(1, CHW)

    nb2, lt2 = pass2_blocks or _choose_pass2_blocks(
        N, CHW, itemsize, _TARGET_STEP_BYTES, pipe_budget)
    assert nb2 == N or nb2 % 8 == 0, "pass-2 image block must be 8-aligned or N"
    assert lt2 == CHW or lt2 % 128 == 0, "lane tile must be 128-aligned"
    n_g2 = pl.cdiv(N, nb2)
    n_lt2 = pl.cdiv(CHW, lt2)

    cost2 = pl.CostEstimate(
        flops=2 * N * CHW, transcendentals=0,
        bytes_accessed=N * CHW * itemsize * 2 + 2 * CHW * 4)

    # Grid order (lane_tiles, groups): a/b tiles stay resident across groups.
    y2 = pl.pallas_call(
        _affine_kernel,
        out_shape=jax.ShapeDtypeStruct((N, CHW), x.dtype),
        grid=(n_lt2, n_g2),
        in_specs=[pl.BlockSpec((nb2, lt2), lambda l, g: (g, l)),
                  pl.BlockSpec((1, lt2), lambda l, g: (0, l)),
                  pl.BlockSpec((1, lt2), lambda l, g: (0, l))],
        out_specs=pl.BlockSpec((nb2, lt2), lambda l, g: (g, l)),
        compiler_params=pltpu.CompilerParams(
            dimension_semantics=("parallel", "parallel"),
            vmem_limit_bytes=vmem_limit),
        cost_estimate=cost2,
    )(x2, a2, b2)
    y = y2.reshape(N, C, H, W)

    # ---- state update (tiny per-channel glue, mirrors the torch module) ----
    new_state = dict(state)
    new_state["initialized"] = True
    if training:
        m = state["momentum"]
        new_state["running_avg_mean"] = (
            run_mean + m * (bmean - run_mean)).reshape(1, C, 1, 1)
        new_state["running_avg_std"] = (
            run_std + m * (bstd - run_std)).reshape(1, C, 1, 1)
        if state["r_max"] < state["max_r_max"]:
            new_state["r_max"] = state["r_max"] + state["r_max_inc_step"] * N
        if state["d_max"] < state["max_d_max"]:
            new_state["d_max"] = state["d_max"] + state["d_max_inc_step"] * N
    elif not state["initialized"]:
        # first call in eval: init_flag branch sets the running stats
        new_state["running_avg_mean"] = bmean.reshape(1, C, 1, 1)
        new_state["running_avg_std"] = bstd.reshape(1, C, 1, 1)
    # else: eval with initialized state leaves the buffers untouched (as torch)
    return y, new_state


# ----------------------------------------------------------------------------
# Pure-JAX reference (reproduces the PyTorch forward exactly)
# ----------------------------------------------------------------------------
def _reference_forward(x, state, training=True):
    x = x.astype(jnp.float32)
    bmean = jnp.mean(x, axis=(0, 2, 3), keepdims=True)
    bstd = jnp.clip(jnp.std(x, axis=(0, 2, 3), keepdims=True, ddof=1),
                    state["eps"], 1e10)
    if not state["initialized"]:
        rmean, rstd = bmean, bstd
    else:
        rmean, rstd = state["running_avg_mean"], state["running_avg_std"]
    if training:
        r = jnp.clip(bstd / rstd, 1.0 / state["r_max"], state["r_max"])
        d = jnp.clip((bmean - rmean) / rstd, -state["d_max"], state["d_max"])
        xn = (x - bmean) * r / bstd + d
    else:
        xn = (x - rmean) / rstd
    return state["gamma"] * xn + state["beta"]


if __name__ == "__main__":
    key = jax.random.PRNGKey(0)
    N, C, H, W = 2, 4, 16, 16
    x = jax.random.normal(key, (N, C, H, W), dtype=jnp.float32)

    state = init_batch_renorm2d_state(C)
    state["gamma"] = (1.0 + 0.1 * jnp.arange(C, dtype=jnp.float32)).reshape(1, C, 1, 1)
    state["beta"] = (0.05 * jnp.arange(C, dtype=jnp.float32)).reshape(1, C, 1, 1)

    # 1) first (training) call — exercises the init path, default block sizes
    y1, state1 = batch_renorm2d_forward(x, state, training=True)
    y1 = jax.block_until_ready(y1)
    ref1 = _reference_forward(x, state, training=True)
    assert jnp.allclose(y1, ref1, atol=1e-4, rtol=1e-4)

    # 2) eval call with updated running stats (reduction pass skipped)
    y2, _ = batch_renorm2d_forward(x, state1, training=False)
    y2 = jax.block_until_ready(y2)
    ref2 = _reference_forward(x, state1, training=False)
    assert jnp.allclose(y2, ref2, atol=1e-4, rtol=1e-4)

    # 3) forced small tiles — exercises multi-step lane accumulation (pl.when
    #    init/finalize) and lane tiling of the flattened affine pass
    y3, _ = batch_renorm2d_forward(x, state1, training=True,
                                   pass1_blocks=(1, 128), pass2_blocks=(2, 128))
    y3 = jax.block_until_ready(y3)
    ref3 = _reference_forward(x, state1, training=True)
    assert jnp.allclose(y3, ref3, atol=1e-4, rtol=1e-4)

    # 4) non-128-divisible spatial extent — tail masking in pass 1 and a
    #    partial (masked) last lane tile in pass 2
    xb = jax.random.normal(jax.random.PRNGKey(1), (2, C, 12, 12), jnp.float32)
    y4, _ = batch_renorm2d_forward(xb, state, training=True,
                                   pass1_blocks=(2, 128), pass2_blocks=(2, 128))
    y4 = jax.block_until_ready(y4)
    ref4 = _reference_forward(xb, state, training=True)
    assert jnp.allclose(y4, ref4, atol=1e-4, rtol=1e-4)

    # 5) bf16 I/O — native-dtype read/write, f32 math in registers
    xh = x.astype(jnp.bfloat16)
    y5, _ = batch_renorm2d_forward(xh, state, training=True)
    y5 = jax.block_until_ready(y5)
    ref5 = _reference_forward(xh, state, training=True)
    assert jnp.allclose(y5.astype(jnp.float32), ref5, atol=5e-2, rtol=5e-2)

    print("KERNEL_OK")
</pallas_src>

<mosaic_0001>
module attributes {stable_mosaic.version = 11 : i64} {
  func.func @_reduce_kernel(%arg0: i32, %arg1: i32, %arg2: memref<1x4x1xf32, #tpu.memory_space<vmem>>, %arg3: memref<2x4x256xf32, #tpu.memory_space<vmem>>, %arg4: memref<1x2x4x1xf32, #tpu.memory_space<vmem>>, %arg5: memref<2x4x1xf32, #tpu.memory_space<vmem>>) attributes {dimension_semantics = [#tpu.dimension_semantics<parallel>, #tpu.dimension_semantics<arbitrary>], iteration_bounds = array<i64: 1, 1>, scalar_prefetch = 0 : i64, scratch_operands = 1 : i64, tpu.core_type = #tpu.core_type<tc>, window_params = [{pipeline_mode = #tpu.pipeline_mode<synchronous>, transform_indices = @transform_0, window_bounds = array<i64: 1, 4, 1>}, {transform_indices = @transform_1, window_bounds = array<i64: 2, 4, 256>}, {transform_indices = @transform_2, window_bounds = array<i64: 1, 2, 4, 1>}]} {
    %c0_i32 = arith.constant 0 : i32
    %0 = arith.cmpi eq, %arg1, %c0_i32 : i32
    %1 = arith.extui %0 : i1 to i32
    %c0_i32_0 = arith.constant 0 : i32
    %2 = arith.cmpi ne, %1, %c0_i32_0 : i32
    scf.if %2 {
      %cst_22 = arith.constant 0.000000e+00 : f32
      %31 = vector.broadcast %cst_22 : f32 to vector<2x4x1xf32>
      %c0_23 = arith.constant 0 : index
      %c0_24 = arith.constant 0 : index
      %c0_25 = arith.constant 0 : index
      %32 = vector.load %arg5[%c0_23, %c0_24, %c0_25] : memref<2x4x1xf32, #tpu.memory_space<vmem>>, vector<2x4x1xf32>
      tpu.vector_store %arg5[%c0_23, %c0_24, %c0_25], %31 {strides = array<i32>} : memref<2x4x1xf32, #tpu.memory_space<vmem>>, vector<2x4x1xf32>,
    } else {
    }
    %c0 = arith.constant 0 : index
    %c0_1 = arith.constant 0 : index
    %c0_2 = arith.constant 0 : index
    %3 = vector.load %arg3[%c0, %c0_1, %c0_2] : memref<2x4x256xf32, #tpu.memory_space<vmem>>, vector<2x4x256xf32>
    %c0_3 = arith.constant 0 : index
    %c0_4 = arith.constant 0 : index
    %c0_5 = arith.constant 0 : index
    %4 = vector.load %arg2[%c0_3, %c0_4, %c0_5] : memref<1x4x1xf32, #tpu.memory_space<vmem>>, vector<1x4x1xf32>
    %5 = vector.shape_cast %4 : vector<1x4x1xf32> to vector<4x1xf32>
    %6 = vector.shape_cast %5 : vector<4x1xf32> to vector<1x4x1xf32>
    %7 = vector.broadcast %6 : vector<1x4x1xf32> to vector<2x4x256xf32>
    %8 = arith.subf %3, %7 : vector<2x4x256xf32>
    %cst = arith.constant dense<0.000000e+00> : vector<4x256xf32>
    %9 = vector.multi_reduction <add>, %8, %cst [0] : vector<2x4x256xf32> to vector<4x256xf32>
    %10 = arith.mulf %8, %8 : vector<2x4x256xf32>
    %cst_6 = arith.constant dense<0.000000e+00> : vector<4x256xf32>
    %11 = vector.multi_reduction <add>, %10, %cst_6 [0] : vector<2x4x256xf32> to vector<4x256xf32>
    %c0_7 = arith.constant 0 : index
    %c0_8 = arith.constant 0 : index
    %c0_9 = arith.constant 0 : index
    %12 = vector.load %arg5[%c0_7, %c0_8, %c0_9] : memref<2x4x1xf32, #tpu.memory_space<vmem>>, vector<1x4x1xf32>
    %13 = vector.shape_cast %12 : vector<1x4x1xf32> to vector<4x1xf32>
    %cst_10 = arith.constant dense<0.000000e+00> : vector<4xf32>
    %14 = vector.multi_reduction <add>, %9, %cst_10 [1] : vector<4x256xf32> to vector<4xf32>
    %15 = vector.shape_cast %14 : vector<4xf32> to vector<4x1xf32>
    %16 = arith.addf %13, %15 : vector<4x1xf32>
    %c0_11 = arith.constant 0 : index
    %c0_12 = arith.constant 0 : index
    %c0_13 = arith.constant 0 : index
    %17 = vector.load %arg5[%c0_11, %c0_12, %c0_13] : memref<2x4x1xf32, #tpu.memory_space<vmem>>, vector<1x4x1xf32>
    %18 = vector.shape_cast %17 : vector<1x4x1xf32> to vector<4x1xf32>
    %19 = vector.shape_cast %16 : vector<4x1xf32> to vector<1x4x1xf32>
    tpu.vector_store %arg5[%c0_11, %c0_12, %c0_13], %19 {strides = array<i32>} : memref<2x4x1xf32, #tpu.memory_space<vmem>>, vector<1x4x1xf32>,
    %c1 = arith.constant 1 : index
    %c0_14 = arith.constant 0 : index
    %c0_15 = arith.constant 0 : index
    %20 = vector.load %arg5[%c1, %c0_14, %c0_15] : memref<2x4x1xf32, #tpu.memory_space<vmem>>, vector<1x4x1xf32>
    %21 = vector.shape_cast %20 : vector<1x4x1xf32> to vector<4x1xf32>
    %cst_16 = arith.constant dense<0.000000e+00> : vector<4xf32>
    %22 = vector.multi_reduction <add>, %11, %cst_16 [1] : vector<4x256xf32> to vector<4xf32>
    %23 = vector.shape_cast %22 : vector<4xf32> to vector<4x1xf32>
    %24 = arith.addf %21, %23 : vector<4x1xf32>
    %c1_17 = arith.constant 1 : index
    %c0_18 = arith.constant 0 : index
    %c0_19 = arith.constant 0 : index
    %25 = vector.load %arg5[%c1_17, %c0_18, %c0_19] : memref<2x4x1xf32, #tpu.memory_space<vmem>>, vector<1x4x1xf32>
    %26 = vector.shape_cast %25 : vector<1x4x1xf32> to vector<4x1xf32>
    %27 = vector.shape_cast %24 : vector<4x1xf32> to vector<1x4x1xf32>
    tpu.vector_store %arg5[%c1_17, %c0_18, %c0_19], %27 {strides = array<i32>} : memref<2x4x1xf32, #tpu.memory_space<vmem>>, vector<1x4x1xf32>,
    %c0_i32_20 = arith.constant 0 : i32
    %28 = arith.cmpi eq, %arg1, %c0_i32_20 : i32
    %29 = arith.extui %28 : i1 to i32
    %c0_i32_21 = arith.constant 0 : i32
    %30 = arith.cmpi ne, %29, %c0_i32_21 : i32
    scf.if %30 {
      %c0_22 = arith.constant 0 : index
      %c0_23 = arith.constant 0 : index
      %c0_24 = arith.constant 0 : index
      %31 = vector.load %arg5[%c0_22, %c0_23, %c0_24] : memref<2x4x1xf32, #tpu.memory_space<vmem>>, vector<2x4x1xf32>
      %c0_25 = arith.constant 0 : index
      %c0_26 = arith.constant 0 : index
      %c0_27 = arith.constant 0 : index
      %c0_28 = arith.constant 0 : index
      %32 = vector.load %arg4[%c0_25, %c0_26, %c0_27, %c0_28] : memref<1x2x4x1xf32, #tpu.memory_space<vmem>>, vector<1x2x4x1xf32>
      %33 = vector.shape_cast %32 : vector<1x2x4x1xf32> to vector<2x4x1xf32>
      %34 = vector.shape_cast %31 : vector<2x4x1xf32> to vector<1x2x4x1xf32>
      tpu.vector_store %arg4[%c0_25, %c0_26, %c0_27, %c0_28], %34 {strides = array<i32>} : memref<1x2x4x1xf32, #tpu.memory_space<vmem>>, vector<1x2x4x1xf32>,
    } else {
    }
    return
  }
  func.func @transform_0(%arg0: i32, %arg1: i32) -> (i32, i32, i32) {
    %c0_i32 = arith.constant 0 : i32
    %c0_i32_0 = arith.constant 0 : i32
    %c0_i32_1 = arith.constant 0 : i32
    %c0_i32_2 = arith.constant 0 : i32
    return %c0_i32, %c0_i32_0, %c0_i32_1 : i32, i32, i32
  }
  func.func @transform_1(%arg0: i32, %arg1: i32) -> (i32, i32, i32) {
    %c0_i32 = arith.constant 0 : i32
    %c0_i32_0 = arith.constant 0 : i32
    return %arg0, %c0_i32, %arg1 : i32, i32, i32
  }
  func.func @transform_2(%arg0: i32, %arg1: i32) -> (i32, i32, i32, i32) {
    %c0_i32 = arith.constant 0 : i32
    %c0_i32_0 = arith.constant 0 : i32
    %c0_i32_1 = arith.constant 0 : i32
    %c0_i32_2 = arith.constant 0 : i32
    return %arg0, %c0_i32, %c0_i32_0, %c0_i32_1 : i32, i32, i32, i32
  }
}

</mosaic_0001>

<llo_original>
// kernel: tpu_custom_call.1
$region0: #{tpu_custom_call.1}
  #allocation0 [shape = 'u32[]', space=smem, size = 0x4, offset = 0x4, fixed_abs, tag = 'smem constant byte address 0x4 - core index']
  #allocation1 [shape = 'u32[72,128]{1,0:T(1,128)}', space=vmem, size = 0x9000, scoped, tag = 'internal scratch']
  #allocation2 [shape = 'f32[2,4,1]{2,1,0:T(4,128)}', space=vmem, size = 0x1000, scoped, tag = 'scratch operand']
  %s0 = inlined_call_operand.vmem [shape: f32[1,4,1], index: 0, kind: input, shape index: {}]
  %s1 = inlined_call_operand.hbm [shape: f32[2,4,256], index: 1, kind: input, shape index: {}]
  %s2 = inlined_call_operand.vmem [shape: f32[1,2,4,1], index: 2, kind: output, shape index: {}]
  %s3 = sld [smem:[#allocation0]]
  $region30: #{tpu_custom_call.1} parent=0
    _
  %s5 = ssub.s32 1, %s3
  %s6 = scalar_select 0, %s5, %s3
  $region1: #{tpu_custom_call.1} parent=0
    #allocation3 [shape = 'u8[8192]{0}', space=vmem, size = 0x2000, scoped, tag = 'input window, operand 1, single buffered']
    #allocation4 [shape = 's32[1]{0}', space=sflag, size = 0x4, scoped, tag = 'scoped memory for tpu_custom_call.1']
    %7 = vsyncpa [#allocation4], 0
    // Predicated region
    $region2: #{tpu_custom_call.1} parent=1 // pred_check
      _
    $region3: #{tpu_custom_call.1} parent=1 // pred_check_branch
      %9 = sbr.rel (0) target = $region5
    $region4: #{tpu_custom_call.1} parent=1 // pred_region
      _
    $region5: #{tpu_custom_call.1} parent=1 // pred_fallthru
      _
    // Predicated region
    $region6: #{tpu_custom_call.1} parent=1 // pred_check
      _
    $region7: #{tpu_custom_call.1} parent=1 // pred_check_branch
      %11 = sbr.rel (0) target = $region9
    $region8: #{tpu_custom_call.1} parent=1 // pred_region
      %13 = vsyncadd [#allocation4], 0
      %s14 = sshll.u32 %s1, 4
      %s15 = int_to_ptr.hbm [resolvable:$true] %s14
      %s16 = sshll.u32 [#allocation3], 4
      %s17 = int_to_ptr.vmem [resolvable:$true] %s16
      %22 = dma.hbm_to_vmem [thread:$0]  %s15, 256, %s17, [#allocation4], 128, 128, 8
    $region9: #{tpu_custom_call.1} parent=1 // pred_fallthru
      _
    // Predicated region
    $region10: #{tpu_custom_call.1} parent=1 // pred_check
      _
    $region11: #{tpu_custom_call.1} parent=1 // pred_check_branch
      %24 = sbr.rel (0) target = $region13
    $region12: #{tpu_custom_call.1} parent=1 // pred_region
      %26 = dma.done [#allocation4], 256
    $region13: #{tpu_custom_call.1} parent=1 // pred_fallthru
      _
    %p27 = scmp.eq.s32.totalorder 0, 0
    // Predicated region
    $region14: #{tpu_custom_call.1} parent=1 // pred_check
      %p28 = pneg %p27
    $region15: #{tpu_custom_call.1} parent=1 // pred_check_branch
      %30 = sbr.rel (%p28) target = $region17
    $region16: #{tpu_custom_call.1} parent=1 // pred_region
      %vm31 = vcmask 3072
      %32 = vst.msk [vmem:[#allocation2] sm:$0xf] %vm31, 0.0
      %33 = vst.msk [vmem:[#allocation2 + $0x4] sm:$0xf] %vm31, 0.0
    $region17: #{tpu_custom_call.1} parent=1 // pred_fallthru
      _
    %v34 = vld [vmem:[#allocation3] sm:$0xff]
    %v35 = vld [vmem:[#allocation3 + $0x8] sm:$0xff]
    %v36 = vld [vmem:[%s0] sm:$0xf]
    %38 = vset.pattern.permute.xlu0 0
    %39 = vperm.xlu0 %38, %v36
    %v40 = vpop.permute.xlu0 %39
    %v42 = vunpack.c.l.s4 839922192
    %v43 = vunpack.c.0.s8 %v42
    %v44 = vperm.slane %v40, %v43
    %v46 = vsub.f32 %v34, %v44
    %v47 = vsub.f32 %v35, %v44
    %50 = vst [vmem:[#allocation1] ss:$2 sm:$0xff] %v46
    %v51 = vld.sshfl [vmem:[#allocation1] sm:$0xff pattern:$0x75316420]
    %v52 = vld.sshfl [vmem:[#allocation1 + $0x8] sm:$0xff pattern:$0x75316420]
    %s53 = scalar_lea.vmem [#allocation1], 16
    %54 = vst [vmem:[%s53] ss:$2 sm:$0xff] %v47
    %v55 = vld.sshfl [vmem:[#allocation1 + $0x10] sm:$0xff pattern:$0x75316420]
    %v56 = vld.sshfl [vmem:[#allocation1 + $0x18] sm:$0xff pattern:$0x75316420]
    %vm61 = vcmask 1043456
    %v62 = vsel %vm61, %v51, 0.0
    %v63 = vsel %vm61, %v55, 0.0
    %v64 = vadd.f32 %v62, %v63
    %v65 = vsel %vm61, %v52, 0.0
    %v66 = vsel %vm61, %v56, 0.0
    %v67 = vadd.f32 %v65, %v66
    %v68 = vmul.f32 %v46, %v46
    %v69 = vmul.f32 %v47, %v47
    %72 = vst [vmem:[#allocation1] ss:$2 sm:$0xff] %v68
    %v73 = vld.sshfl [vmem:[#allocation1] sm:$0xff pattern:$0x75316420]
    %v74 = vld.sshfl [vmem:[#allocation1 + $0x8] sm:$0xff pattern:$0x75316420]
    %s75 = scalar_lea.vmem [#allocation1], 16
    %76 = vst [vmem:[%s75] ss:$2 sm:$0xff] %v69
    %v77 = vld.sshfl [vmem:[#allocation1 + $0x10] sm:$0xff pattern:$0x75316420]
    %v78 = vld.sshfl [vmem:[#allocation1 + $0x18] sm:$0xff pattern:$0x75316420]
    %v83 = vsel %vm61, %v73, 0.0
    %v84 = vsel %vm61, %v77, 0.0
    %v85 = vadd.f32 %v83, %v84
    %v86 = vsel %vm61, %v74, 0.0
    %v87 = vsel %vm61, %v78, 0.0
    %v88 = vadd.f32 %v86, %v87
    %v89 = vld [vmem:[#allocation2] sm:$0xf]
    %v90 = vsel %vm61, %v64, 0.0
    %v91 = vsel %vm61, %v67, 0.0
    %v92 = vadd.f32 %v90, %v91
    %93 = vadd.xlane.f32.xlu0 %v92
    %v94 = vpop.xlane.xlu0 %93
    %v95 = vadd.f32 %v89, %v94
    %vm96 = vcmask 3072
    %97 = vst.msk [vmem:[#allocation2] sm:$0xf] %vm96, %v95
    %s98 = scalar_lea.vmem [#allocation2], 4
    %v99 = vld [vmem:[%s98] sm:$0xf]
    %v100 = vsel %vm61, %v85, 0.0
    %v101 = vsel %vm61, %v88, 0.0
    %v102 = vadd.f32 %v100, %v101
    %103 = vadd.xlane.f32.xlu0 %v102
    %v104 = vpop.xlane.xlu0 %103
    %v105 = vadd.f32 %v99, %v104
    %106 = vst.msk [vmem:[%s98] sm:$0xf] %vm96, %v105
    // Predicated region
    $region18: #{tpu_custom_call.1} parent=1 // pred_check
      %p107 = pneg %p27
    $region19: #{tpu_custom_call.1} parent=1 // pred_check_branch
      %109 = sbr.rel (%p107) target = $region21
    $region20: #{tpu_custom_call.1} parent=1 // pred_region
      %v110 = vld [vmem:[#allocation2] sm:$0xf]
      %v111 = vld [vmem:[#allocation2 + $0x4] sm:$0xf]
      %112 = vst.msk [vmem:[%s2] sm:$0xf] %vm96, %v110
      %113 = vst.msk [vmem:[%s2 + $0x4] sm:$0xf] %vm96, %v111
    $region21: #{tpu_custom_call.1} parent=1 // pred_fallthru
      _
    // Predicated region
    $region22: #{tpu_custom_call.1} parent=1 // pred_check
      _
    $region23: #{tpu_custom_call.1} parent=1 // pred_check_branch
      %115 = sbr.rel (0) target = $region25
    $region24: #{tpu_custom_call.1} parent=1 // pred_region
      _
    $region25: #{tpu_custom_call.1} parent=1 // pred_fallthru
      _
    // Predicated region
    $region26: #{tpu_custom_call.1} parent=1 // pred_check
      _
    $region27: #{tpu_custom_call.1} parent=1 // pred_check_branch
      %117 = sbr.rel (0) target = $region29
    $region28: #{tpu_custom_call.1} parent=1 // pred_region
      _
    $region29: #{tpu_custom_call.1} parent=1 // pred_fallthru
      _
    %118 = vsyncpa [#allocation4], 1

</llo_original>
